<compile_context>
chip_gen: v5e
topology: v5e:2x2
jax: 0.10.0
libtpu: 0.0.40
codegen_flags: <defaults>
</compile_context>

<pallas_src>
import functools
import math

import jax
import jax.numpy as jnp
from jax.experimental import pallas as pl
from jax.experimental.pallas import tpu as pltpu


def _activation(h, kind):
    # Mirrors TorchStackingDNN.get_activation: unknown names fall through to ReLU.
    kind = kind.lower()
    if kind == "tanh":
        return jnp.tanh(h)
    if kind == "elu":
        return jnp.where(h > 0, h, jnp.expm1(h))
    if kind == "selu":
        alpha = 1.6732632423543772
        scale = 1.0507009873554805
        return scale * jnp.where(h > 0, h, alpha * jnp.expm1(h))
    return jnp.maximum(h, 0.0)  # relu (default branch in get_activation)


def sdnn_kernel(x_ref, w1x_ref, w1c_ref, b1_ref, w2m_ref, b2_ref, out_ref,
                *, num_blocks, layer_size, activation):
    del layer_size  # layout already encodes it; kept for signature clarity
    # One merged lane-dense MXU pass for the x-dependent part of ALL blocks,
    # plus the concatenated b1 added once.
    base = jnp.dot(x_ref[...], w1x_ref[...],
                   preferred_element_type=jnp.float32) + b1_ref[...]   # [1, NB*L]

    o = None
    for i in range(num_blocks):                       # static unroll (tiny)
        # Block i's pre-activation lives in its own lane slice of `base`
        # (already fully corrected by the FMAs of blocks j < i).  Applying the
        # activation to the whole vreg is free; w2m row i masks other blocks.
        a = _activation(base, activation)                                   # [1, NB*L]
        o = jnp.sum(a * w2m_ref[i:i + 1, :], axis=-1, keepdims=True) \
            + b2_ref[i]                                                     # [1, 1]
        if i + 1 < num_blocks:
            # Rank-1 correction: feature (initial_size + i) == o_i feeds every
            # later block; w1c row i is zero on lanes of blocks <= i.
            base = base + o * w1c_ref[i:i + 1, :]                           # [1, NB*L] FMA

    out_ref[...] = o


def sdnn_forward(x, params, *, initial_size, layer_size, num_blocks, activation):
    assert num_blocks >= 1, "num_blocks must be >= 1"
    assert initial_size >= 1 and layer_size >= 1
    w1x, w1c, b1cat, w2m, b2 = params
    x2 = x.reshape(1, initial_size).astype(jnp.float32)
    kernel = functools.partial(sdnn_kernel, num_blocks=num_blocks,
                               layer_size=layer_size, activation=activation)
    out = pl.pallas_call(
        kernel,
        out_shape=jax.ShapeDtypeStruct((1, 1), jnp.float32),
        in_specs=[
            pl.BlockSpec(memory_space=pltpu.MemorySpace.VMEM),   # x     [1, initial_size]
            pl.BlockSpec(memory_space=pltpu.MemorySpace.VMEM),   # w1x   [initial_size, NB*L]
            pl.BlockSpec(memory_space=pltpu.MemorySpace.VMEM),   # w1c   [NB, NB*L]
            pl.BlockSpec(memory_space=pltpu.MemorySpace.VMEM),   # b1cat [1, NB*L]
            pl.BlockSpec(memory_space=pltpu.MemorySpace.VMEM),   # w2m   [NB, NB*L]
            pl.BlockSpec(memory_space=pltpu.MemorySpace.SMEM),   # b2    [NB]
        ],
        out_specs=pl.BlockSpec(memory_space=pltpu.MemorySpace.VMEM),
    )(x2, w1x, w1c, b1cat, w2m, b2)
    return out[0, 0]


def init_params(key, *, initial_size, layer_size, num_blocks):
    """Deterministic xavier_normal_ weights, zero biases (as in the module's __init__),
    laid out in the merged/lane-dense kernel format."""
    L, NB = layer_size, num_blocks
    NL = NB * L
    w1x = jnp.zeros((initial_size, NL), jnp.float32)   # x-dependent rows of every W1_i^T
    w1c = jnp.zeros((NB, NL), jnp.float32)             # correction row j -> later blocks
    b1cat = jnp.zeros((1, NL), jnp.float32)            # zero (nn.init.constant_)
    w2m = jnp.zeros((NB, NL), jnp.float32)             # W2_i masked to its own lane slice
    b2 = jnp.zeros((NB,), jnp.float32)                 # zero (nn.init.constant_)
    w1_raw, w2_raw = [], []
    for i in range(NB):
        in_i = initial_size + i
        key, k1, k2 = jax.random.split(key, 3)
        std1 = math.sqrt(2.0 / (in_i + L))
        W1 = std1 * jax.random.normal(k1, (L, in_i), jnp.float32)   # torch shape [out, in]
        std2 = math.sqrt(2.0 / (L + 1))
        W2 = std2 * jax.random.normal(k2, (1, L), jnp.float32)
        # base part: rows 0..initial_size-1 of W1_i^T into block i's lane slice
        w1x = w1x.at[:, i * L:(i + 1) * L].set(W1[:, :initial_size].T)
        # corrections: feature initial_size + j (j < i) feeds block i via W1[:, initial_size + j]
        if i > 0:
            w1c = w1c.at[:i, i * L:(i + 1) * L].set(
                W1[:, initial_size:initial_size + i].T)
        w2m = w2m.at[i, i * L:(i + 1) * L].set(W2[0])
        w1_raw.append(W1)
        w2_raw.append(W2)
    return (w1x, w1c, b1cat, w2m, b2), (w1_raw, w2_raw)


def reference_forward(x, w1_raw, w2_raw, *, activation):
    """Pure-JAX re-implementation of the PyTorch forward (dropout=0, zero biases)."""
    cur = x
    out = None
    for W1, W2 in zip(w1_raw, w2_raw):
        h = _activation(cur @ W1.T, activation)   # biases are zero
        out = h @ W2.T                            # shape (1,)
        cur = jnp.concatenate([cur, out], axis=0)
    return out[0]


if __name__ == "__main__":
    # model_params = {'initial_size': 16, 'layer_size': 32, 'num_blocks': 4,
    #                 'activation': 'tanh', 'dropout': 0.0}
    # TODO(synk): dropout > 0 (training-mode random mask) is not implemented; dropout=0 here.
    initial_size, layer_size, num_blocks, activation = 16, 32, 4, "tanh"

    key = jax.random.PRNGKey(0)
    key, kx = jax.random.split(key)
    x = jax.random.normal(kx, (initial_size,), jnp.float32)

    params, (w1_raw, w2_raw) = init_params(
        key, initial_size=initial_size, layer_size=layer_size, num_blocks=num_blocks)

    y = sdnn_forward(x, params,
                     initial_size=initial_size, layer_size=layer_size,
                     num_blocks=num_blocks, activation=activation)
    y = jax.block_until_ready(y)

    y_ref = reference_forward(x, w1_raw, w2_raw, activation=activation)
    assert jnp.allclose(y, y_ref, atol=1e-5, rtol=1e-5), (y, y_ref)
    print("KERNEL_OK")
</pallas_src>

<mosaic_0001>
module attributes {stable_mosaic.version = 11 : i64} {
  func.func @sdnn_kernel(%arg0: memref<1x16xf32, #tpu.memory_space<vmem>>, %arg1: memref<16x128xf32, #tpu.memory_space<vmem>>, %arg2: memref<4x128xf32, #tpu.memory_space<vmem>>, %arg3: memref<1x128xf32, #tpu.memory_space<vmem>>, %arg4: memref<4x128xf32, #tpu.memory_space<vmem>>, %arg5: memref<4xf32, #tpu.memory_space<smem>>, %arg6: memref<1x1xf32, #tpu.memory_space<vmem>>) attributes {dimension_semantics = [], scalar_prefetch = 0 : i64, scratch_operands = 0 : i64, tpu.core_type = #tpu.core_type<tc>} {
    %c0 = arith.constant 0 : index
    %c0_0 = arith.constant 0 : index
    %0 = vector.load %arg0[%c0, %c0_0] : memref<1x16xf32, #tpu.memory_space<vmem>>, vector<1x16xf32>
    %c0_1 = arith.constant 0 : index
    %c0_2 = arith.constant 0 : index
    %1 = vector.load %arg1[%c0_1, %c0_2] : memref<16x128xf32, #tpu.memory_space<vmem>>, vector<16x128xf32>
    %cst = arith.constant dense<0.000000e+00> : vector<1x128xf32>
    %2 = tpu.matmul %0, %1, %cst {dimension_numbers = #tpu.dot_dimension_numbers<[1], [0], [0], [1], [0, 0, 1, 1], [], []>} : vector<1x16xf32>, vector<16x128xf32>, vector<1x128xf32> -> vector<1x128xf32>
    %c0_3 = arith.constant 0 : index
    %c0_4 = arith.constant 0 : index
    %3 = vector.load %arg3[%c0_3, %c0_4] : memref<1x128xf32, #tpu.memory_space<vmem>>, vector<1x128xf32>
    %4 = arith.addf %2, %3 : vector<1x128xf32>
    %5 = math.tanh %4 : vector<1x128xf32>
    %c0_5 = arith.constant 0 : index
    %c0_6 = arith.constant 0 : index
    %6 = vector.load %arg4[%c0_5, %c0_6] : memref<4x128xf32, #tpu.memory_space<vmem>>, vector<1x128xf32>
    %7 = arith.mulf %5, %6 : vector<1x128xf32>
    %cst_7 = arith.constant dense<0.000000e+00> : vector<1xf32>
    %8 = vector.multi_reduction <add>, %7, %cst_7 [1] : vector<1x128xf32> to vector<1xf32>
    %9 = vector.shape_cast %8 : vector<1xf32> to vector<1x1xf32>
    %c0_8 = arith.constant 0 : index
    %10 = memref.load %arg5[%c0_8] : memref<4xf32, #tpu.memory_space<smem>>
    %11 = vector.broadcast %10 : f32 to vector<1x1xf32>
    %12 = arith.addf %9, %11 : vector<1x1xf32>
    %c0_9 = arith.constant 0 : index
    %c0_10 = arith.constant 0 : index
    %13 = vector.load %arg2[%c0_9, %c0_10] : memref<4x128xf32, #tpu.memory_space<vmem>>, vector<1x128xf32>
    %14 = vector.broadcast %12 : vector<1x1xf32> to vector<1x128xf32>
    %15 = arith.mulf %14, %13 : vector<1x128xf32>
    %16 = arith.addf %4, %15 : vector<1x128xf32>
    %17 = math.tanh %16 : vector<1x128xf32>
    %c1 = arith.constant 1 : index
    %c0_11 = arith.constant 0 : index
    %18 = vector.load %arg4[%c1, %c0_11] : memref<4x128xf32, #tpu.memory_space<vmem>>, vector<1x128xf32>
    %19 = arith.mulf %17, %18 : vector<1x128xf32>
    %cst_12 = arith.constant dense<0.000000e+00> : vector<1xf32>
    %20 = vector.multi_reduction <add>, %19, %cst_12 [1] : vector<1x128xf32> to vector<1xf32>
    %21 = vector.shape_cast %20 : vector<1xf32> to vector<1x1xf32>
    %c1_13 = arith.constant 1 : index
    %22 = memref.load %arg5[%c1_13] : memref<4xf32, #tpu.memory_space<smem>>
    %23 = vector.broadcast %22 : f32 to vector<1x1xf32>
    %24 = arith.addf %21, %23 : vector<1x1xf32>
    %c1_14 = arith.constant 1 : index
    %c0_15 = arith.constant 0 : index
    %25 = vector.load %arg2[%c1_14, %c0_15] : memref<4x128xf32, #tpu.memory_space<vmem>>, vector<1x128xf32>
    %26 = vector.broadcast %24 : vector<1x1xf32> to vector<1x128xf32>
    %27 = arith.mulf %26, %25 : vector<1x128xf32>
    %28 = arith.addf %16, %27 : vector<1x128xf32>
    %29 = math.tanh %28 : vector<1x128xf32>
    %c2 = arith.constant 2 : index
    %c0_16 = arith.constant 0 : index
    %30 = vector.load %arg4[%c2, %c0_16] : memref<4x128xf32, #tpu.memory_space<vmem>>, vector<1x128xf32>
    %31 = arith.mulf %29, %30 : vector<1x128xf32>
    %cst_17 = arith.constant dense<0.000000e+00> : vector<1xf32>
    %32 = vector.multi_reduction <add>, %31, %cst_17 [1] : vector<1x128xf32> to vector<1xf32>
    %33 = vector.shape_cast %32 : vector<1xf32> to vector<1x1xf32>
    %c2_18 = arith.constant 2 : index
    %34 = memref.load %arg5[%c2_18] : memref<4xf32, #tpu.memory_space<smem>>
    %35 = vector.broadcast %34 : f32 to vector<1x1xf32>
    %36 = arith.addf %33, %35 : vector<1x1xf32>
    %c2_19 = arith.constant 2 : index
    %c0_20 = arith.constant 0 : index
    %37 = vector.load %arg2[%c2_19, %c0_20] : memref<4x128xf32, #tpu.memory_space<vmem>>, vector<1x128xf32>
    %38 = vector.broadcast %36 : vector<1x1xf32> to vector<1x128xf32>
    %39 = arith.mulf %38, %37 : vector<1x128xf32>
    %40 = arith.addf %28, %39 : vector<1x128xf32>
    %41 = math.tanh %40 : vector<1x128xf32>
    %c3 = arith.constant 3 : index
    %c0_21 = arith.constant 0 : index
    %42 = vector.load %arg4[%c3, %c0_21] : memref<4x128xf32, #tpu.memory_space<vmem>>, vector<1x128xf32>
    %43 = arith.mulf %41, %42 : vector<1x128xf32>
    %cst_22 = arith.constant dense<0.000000e+00> : vector<1xf32>
    %44 = vector.multi_reduction <add>, %43, %cst_22 [1] : vector<1x128xf32> to vector<1xf32>
    %45 = vector.shape_cast %44 : vector<1xf32> to vector<1x1xf32>
    %c3_23 = arith.constant 3 : index
    %46 = memref.load %arg5[%c3_23] : memref<4xf32, #tpu.memory_space<smem>>
    %47 = vector.broadcast %46 : f32 to vector<1x1xf32>
    %48 = arith.addf %45, %47 : vector<1x1xf32>
    %c0_24 = arith.constant 0 : index
    %c0_25 = arith.constant 0 : index
    %49 = vector.load %arg6[%c0_24, %c0_25] : memref<1x1xf32, #tpu.memory_space<vmem>>, vector<1x1xf32>
    tpu.vector_store %arg6[%c0_24, %c0_25], %48 {strides = array<i32>} : memref<1x1xf32, #tpu.memory_space<vmem>>, vector<1x1xf32>,
    return
  }
}

</mosaic_0001>

<llo_original>
// kernel: tpu_custom_call.1
$region0: #{tpu_custom_call.1}
  #allocation0 [shape = 'u32[]', space=smem, size = 0x4, offset = 0x4, fixed_abs, tag = 'smem constant byte address 0x4 - core index']
  #allocation1 [shape = 'u32[72,128]{1,0:T(1,128)}', space=vmem, size = 0x9000, scoped, tag = 'internal scratch']
  %s0 = inlined_call_operand.hbm [shape: f32[1,16], index: 0, kind: input, shape index: {}]
  %s1 = inlined_call_operand.hbm [shape: f32[16,128], index: 1, kind: input, shape index: {}]
  %s2 = inlined_call_operand.hbm [shape: f32[4,128], index: 2, kind: input, shape index: {}]
  %s3 = inlined_call_operand.vmem [shape: f32[1,128], index: 3, kind: input, shape index: {}]
  %s4 = inlined_call_operand.hbm [shape: f32[4,128], index: 4, kind: input, shape index: {}]
  %s5 = inlined_call_operand.vmem [shape: f32[4], index: 5, kind: input, shape index: {}]
  %s6 = inlined_call_operand.hbm [shape: f32[1,1], index: 6, kind: output, shape index: {}]
  %s7 = sld [smem:[#allocation0]]
  $region54: #{tpu_custom_call.1} parent=0
    _
  %s9 = ssub.s32 1, %s7
  %s10 = scalar_select 0, %s9, %s7
  $region1: #{tpu_custom_call.1} parent=0
    #allocation2 [shape = 'u8[512]{0}', space=vmem, size = 0x400, scoped, tag = 'input window, operand 0, single buffered']
    #allocation3 [shape = 's32[1]{0}', space=sflag, size = 0x4, scoped, tag = 'scoped memory for tpu_custom_call.1']
    #allocation4 [shape = 's32[1]{0}', space=sflag, size = 0x4, scoped, tag = 'scoped memory for tpu_custom_call.1']
    #allocation5 [shape = 's32[1]{0}', space=sflag, size = 0x4, scoped, tag = 'scoped memory for tpu_custom_call.1']
    #allocation6 [shape = 'u8[8192]{0}', space=vmem, size = 0x2000, scoped, tag = 'input window, operand 1, single buffered']
    #allocation7 [shape = 's32[1]{0}', space=sflag, size = 0x4, scoped, tag = 'scoped memory for tpu_custom_call.1']
    #allocation8 [shape = 'u8[2048]{0}', space=vmem, size = 0x800, scoped, tag = 'input window, operand 2, single buffered']
    #allocation9 [shape = 'u8[2048]{0}', space=vmem, size = 0x800, scoped, tag = 'input window, operand 4, single buffered']
    #allocation10 [shape = 's32[1]{0}', space=sflag, size = 0x4, scoped, tag = 'scoped memory for tpu_custom_call.1']
    #allocation11 [shape = 'u8[512]{0}', space=smem, size = 0x200, scoped, tag = 'input window, operand 5, single buffered']
    #allocation12 [shape = 'u8[512]{0}', space=vmem, size = 0x400, scoped, tag = 'output window, operand 0, single buffered']
    %11 = vsyncpa [#allocation3], 0
    %12 = vsyncpa [#allocation7], 0
    %13 = vsyncpa [#allocation10], 0
    %14 = vsyncpa [#allocation5], 0
    %15 = vsyncpa [#allocation4], 0
    // Predicated region
    $region2: #{tpu_custom_call.1} parent=1 // pred_check
      _
    $region3: #{tpu_custom_call.1} parent=1 // pred_check_branch
      %17 = sbr.rel (0) target = $region5
    $region4: #{tpu_custom_call.1} parent=1 // pred_region
      %19 = vsyncadd [#allocation3], 0
      %s21 = sshll.u32 %s0, 4
      %s22 = int_to_ptr.hbm [resolvable:$true] %s21
      %s23 = sshll.u32 [#allocation2], 4
      %s24 = int_to_ptr.vmem [resolvable:$true] %s23
      %26 = dma.hbm_to_vmem [thread:$0]  %s22, 16, %s24, [#allocation3]
    $region5: #{tpu_custom_call.1} parent=1 // pred_fallthru
      _
    // Predicated region
    $region6: #{tpu_custom_call.1} parent=1 // pred_check
      _
    $region7: #{tpu_custom_call.1} parent=1 // pred_check_branch
      %28 = sbr.rel (0) target = $region9
    $region8: #{tpu_custom_call.1} parent=1 // pred_region
      %30 = vsyncadd [#allocation7], 0
      %s31 = sshll.u32 %s1, 4
      %s32 = int_to_ptr.hbm [resolvable:$true] %s31
      %s33 = sshll.u32 [#allocation6], 4
      %s34 = int_to_ptr.vmem [resolvable:$true] %s33
      %39 = dma.hbm_to_vmem [thread:$0]  %s32, 256, %s34, [#allocation7], 128, 128, 8
    $region9: #{tpu_custom_call.1} parent=1 // pred_fallthru
      _
    // Predicated region
    $region10: #{tpu_custom_call.1} parent=1 // pred_check
      _
    $region11: #{tpu_custom_call.1} parent=1 // pred_check_branch
      %41 = sbr.rel (0) target = $region13
    $region12: #{tpu_custom_call.1} parent=1 // pred_region
      %43 = vsyncadd [#allocation7], 0
      %s45 = sshll.u32 %s2, 4
      %s46 = int_to_ptr.hbm [resolvable:$true] %s45
      %s47 = sshll.u32 [#allocation8], 4
      %s48 = int_to_ptr.vmem [resolvable:$true] %s47
      %50 = dma.hbm_to_vmem [thread:$0]  %s46, 64, %s48, [#allocation7]
    $region13: #{tpu_custom_call.1} parent=1 // pred_fallthru
      _
    // Predicated region
    $region14: #{tpu_custom_call.1} parent=1 // pred_check
      _
    $region15: #{tpu_custom_call.1} parent=1 // pred_check_branch
      %52 = sbr.rel (0) target = $region17
    $region16: #{tpu_custom_call.1} parent=1 // pred_region
      _
    $region17: #{tpu_custom_call.1} parent=1 // pred_fallthru
      _
    // Predicated region
    $region18: #{tpu_custom_call.1} parent=1 // pred_check
      _
    $region19: #{tpu_custom_call.1} parent=1 // pred_check_branch
      %54 = sbr.rel (0) target = $region21
    $region20: #{tpu_custom_call.1} parent=1 // pred_region
      %56 = vsyncadd [#allocation10], 0
      %s58 = sshll.u32 %s4, 4
      %s59 = int_to_ptr.hbm [resolvable:$true] %s58
      %s60 = sshll.u32 [#allocation9], 4
      %s61 = int_to_ptr.vmem [resolvable:$true] %s60
      %63 = dma.hbm_to_vmem [thread:$0]  %s59, 64, %s61, [#allocation10]
    $region21: #{tpu_custom_call.1} parent=1 // pred_fallthru
      _
    // Predicated region
    $region22: #{tpu_custom_call.1} parent=1 // pred_check
      _
    $region23: #{tpu_custom_call.1} parent=1 // pred_check_branch
      %65 = sbr.rel (0) target = $region25
    $region24: #{tpu_custom_call.1} parent=1 // pred_region
      %67 = vsyncadd [#allocation5], 0
      %s69 = sshll.u32 %s5, 4
      %s70 = int_to_ptr.vmem [resolvable:$true] %s69
      %72 = dma.vmem_to_smem %s70, 16, [#allocation11], [#allocation5]
    $region25: #{tpu_custom_call.1} parent=1 // pred_fallthru
      _
    // Predicated region
    $region26: #{tpu_custom_call.1} parent=1 // pred_check
      _
    $region27: #{tpu_custom_call.1} parent=1 // pred_check_branch
      %74 = sbr.rel (0) target = $region29
    $region28: #{tpu_custom_call.1} parent=1 // pred_region
      %76 = dma.done [#allocation3], 16
    $region29: #{tpu_custom_call.1} parent=1 // pred_fallthru
      _
    // Predicated region
    $region30: #{tpu_custom_call.1} parent=1 // pred_check
      _
    $region31: #{tpu_custom_call.1} parent=1 // pred_check_branch
      %78 = sbr.rel (0) target = $region33
    $region32: #{tpu_custom_call.1} parent=1 // pred_region
      %80 = dma.done [#allocation7], 256
    $region33: #{tpu_custom_call.1} parent=1 // pred_fallthru
      _
    // Predicated region
    $region34: #{tpu_custom_call.1} parent=1 // pred_check
      _
    $region35: #{tpu_custom_call.1} parent=1 // pred_check_branch
      %82 = sbr.rel (0) target = $region37
    $region36: #{tpu_custom_call.1} parent=1 // pred_region
      %84 = dma.done [#allocation7], 64
    $region37: #{tpu_custom_call.1} parent=1 // pred_fallthru
      _
    // Predicated region
    $region38: #{tpu_custom_call.1} parent=1 // pred_check
      _
    $region39: #{tpu_custom_call.1} parent=1 // pred_check_branch
      %86 = sbr.rel (0) target = $region41
    $region40: #{tpu_custom_call.1} parent=1 // pred_region
      %88 = dma.done [#allocation10], 64
    $region41: #{tpu_custom_call.1} parent=1 // pred_fallthru
      _
    // Predicated region
    $region42: #{tpu_custom_call.1} parent=1 // pred_check
      _
    $region43: #{tpu_custom_call.1} parent=1 // pred_check_branch
      %90 = sbr.rel (0) target = $region45
    $region44: #{tpu_custom_call.1} parent=1 // pred_region
      %92 = dma.done [#allocation5], 16
    $region45: #{tpu_custom_call.1} parent=1 // pred_fallthru
      _
    %93 = sfence
    %v94 = vld [vmem:[#allocation2] sm:$0x1]
    %v95 = vld [vmem:[#allocation6] sm:$0xff]
    %v96 = vld [vmem:[#allocation6 + $0x8] sm:$0xff]
    %v97 = vld [vmem:[%s3] sm:$0x1]
    %vm98 = vcmask 130048
    %v100 = vsel %vm98, %v94, 0
    %102 = vmatpush.msra.mxu0 0.0
    %103 = vmatpush.msra.mxu0 0.0
    %104 = vmatpush.msra.mxu0 0.0
    %105 = vmatpush.msra.mxu0 0.0
    %106 = vmatpush.msra.mxu0 0.0
    %107 = vmatpush.msra.mxu0 0.0
    %108 = vmatpush.msra.mxu0 0.0
    %109 = vmatpush.msra.mxu0 0.0
    %110 = vmatpush.msra.mxu0 0.0
    %111 = vmatpush.msra.mxu0 0.0
    %112 = vmatpush.msra.mxu0 0.0
    %113 = vmatpush.msra.mxu0 0.0
    %114 = vmatpush.msra.mxu0 0.0
    %115 = vmatpush.msra.mxu0 0.0
    %116 = vmatpush.msra.mxu0 %v96
    %117 = vmatpush.msra.mxu0 %v95
    %118 = vmatmul.f32.gmra.mxu0 %v100
    %v119 = vpop.f32.mrf.mxu0
    %v120 = vadd.f32 %v97, %v119
    %121 = vdwg.mxu0
    %v122 = vtanh.pop %v120
    %v123 = vld [vmem:[#allocation9] sm:$0x1]
    %v124 = vmul.f32 %v122, %v123
    %vm125 = vcmask 1040384
    %v126 = vsel %vm125, %v124, 0.0
    %127 = vadd.xlane.f32.xlu0 %v126
    %v128 = vpop.xlane.xlu0 %127
    %s129 = sld [smem:[#allocation11]]
    %v130 = vstv %s129
    %v131 = vadd.f32 %v128, %v130
    %v132 = vld [vmem:[#allocation8] sm:$0x1]
    %v133 = vmul.f32 %v131, %v132
    %v134 = vadd.f32 %v120, %v133
    %v135 = vtanh.pop %v134
    %v136 = vld [vmem:[#allocation9 + $0x1] sm:$0x1]
    %v137 = vmul.f32 %v135, %v136
    %v138 = vsel %vm125, %v137, 0.0
    %139 = vadd.xlane.f32.xlu0 %v138
    %v140 = vpop.xlane.xlu0 %139
    %s141 = sld [smem:[#allocation11 + $0x1]]
    %v142 = vstv %s141
    %v143 = vadd.f32 %v140, %v142
    %v144 = vld [vmem:[#allocation8 + $0x1] sm:$0x1]
    %v145 = vmul.f32 %v143, %v144
    %v146 = vadd.f32 %v134, %v145
    %v147 = vtanh.pop %v146
    %v148 = vld [vmem:[#allocation9 + $0x2] sm:$0x1]
    %v149 = vmul.f32 %v147, %v148
    %v150 = vsel %vm125, %v149, 0.0
    %151 = vadd.xlane.f32.xlu0 %v150
    %v152 = vpop.xlane.xlu0 %151
    %s153 = sld [smem:[#allocation11 + $0x2]]
    %v154 = vstv %s153
    %v155 = vadd.f32 %v152, %v154
    %v156 = vld [vmem:[#allocation8 + $0x2] sm:$0x1]
    %v157 = vmul.f32 %v155, %v156
    %v158 = vadd.f32 %v146, %v157
    %v159 = vtanh.pop %v158
    %v160 = vld [vmem:[#allocation9 + $0x3] sm:$0x1]
    %v161 = vmul.f32 %v159, %v160
    %v162 = vsel %vm125, %v161, 0.0
    %163 = vadd.xlane.f32.xlu0 %v162
    %v164 = vpop.xlane.xlu0 %163
    %s165 = sld [smem:[#allocation11 + $0x3]]
    %v166 = vstv %s165
    %v167 = vadd.f32 %v164, %v166
    %vm168 = vcmask 0
    %169 = vst.msk [vmem:[#allocation12] sm:$0x1] %vm168, %v167
    // Predicated region
    $region46: #{tpu_custom_call.1} parent=1 // pred_check
      _
    $region47: #{tpu_custom_call.1} parent=1 // pred_check_branch
      %171 = sbr.rel (0) target = $region49
    $region48: #{tpu_custom_call.1} parent=1 // pred_region
      %173 = vsyncadd [#allocation4], 0
      %s175 = sshll.u32 [#allocation12], 4
      %s176 = int_to_ptr.vmem [resolvable:$true] %s175
      %s177 = sshll.u32 %s6, 4
      %s178 = int_to_ptr.hbm [resolvable:$true] %s177
      %180 = dma.vmem_to_hbm [thread:$0]  %s176, 16, %s178, [#allocation4]
    $region49: #{tpu_custom_call.1} parent=1 // pred_fallthru
      _
    // Predicated region
    $region50: #{tpu_custom_call.1} parent=1 // pred_check
      _
    $region51: #{tpu_custom_call.1} parent=1 // pred_check_branch
      %182 = sbr.rel (0) target = $region53
    $region52: #{tpu_custom_call.1} parent=1 // pred_region
      %184 = dma.done [#allocation4], 16
    $region53: #{tpu_custom_call.1} parent=1 // pred_fallthru
      _
    %185 = vsyncpa [#allocation3], 1
    %186 = vsyncpa [#allocation7], 1
    %187 = vsyncpa [#allocation10], 1
    %188 = vsyncpa [#allocation4], 1
    %189 = vsyncpa [#allocation5], 1

</llo_original>
